<compile_context>
chip_gen: v7x
topology: tpu7x:2x2x1
jax: 0.10.0
libtpu: 0.0.40
codegen_flags: <defaults>
</compile_context>

<pallas_src>
import numpy as np
import jax
import jax.numpy as jnp
from jax import lax
from jax.experimental import pallas as pl
from jax.experimental.pallas import tpu as pltpu


def _convap_kernel(x_ref, pt_ref, w_ref, b_ref, o_ref, xp_acc):
    """One batch sample per grid row, one HW tile per grid column.

    x_ref : (1, Cin, THW)  input tile, HW on the lane axis (lane-dense stream)
    pt_ref: (THW, S)       transposed adaptive-avg-pool matrix tile
    w_ref : (Cout, Cin)    1x1 conv weight (torch (Cout, Cin) layout), resident
    b_ref : (Cout, 1)      conv bias, resident
    o_ref : (1, Cout, S)   channel-major pooled + L2-normalized descriptor
    xp_acc: (Cin, S)       f32 scratch accumulating pooled inputs over HW tiles
    """
    t = pl.program_id(1)

    @pl.when(t == 0)
    def _():
        xp_acc[...] = jnp.zeros_like(xp_acc)

    # Pool first: partial (Cin, S) += X_tile (Cin, THW) @ Pt_tile (THW, S).
    # Contraction axis (THW) is last-of-LHS / first-of-RHS: native MXU layout.
    xp_acc[...] += jnp.dot(x_ref[0], pt_ref[...],
                           preferred_element_type=jnp.float32)

    @pl.when(t == pl.num_programs(1) - 1)
    def _():
        # 1x1 conv on the *pooled* features (+ bias; exact because pooling rows
        # sum to 1): (Cout, Cin) @ (Cin, S) -> (Cout, S), already channel-major.
        y = jnp.dot(w_ref[...], xp_acc[...],
                    preferred_element_type=jnp.float32) + b_ref[...]
        # F.normalize(p=2, dim=1, eps=1e-12):
        #   1 / max(||y||, 1e-12) == rsqrt(max(sum(y^2), 1e-24))   (EUP rsqrt)
        ss = jnp.sum(y * y)
        inv = lax.rsqrt(jnp.maximum(ss, 1e-24))
        o_ref[0] = (y * inv).astype(o_ref.dtype)


def _build_pool_matrix_t(H, W, s1, s2):
    """(H*W, s1*s2) matrix Pt replicating nn.AdaptiveAvgPool2d((s1, s2)).

    Column (i*s2 + j) holds 1/count over its pooling window.  Columns sum to 1,
    which is what makes the pool-before-conv + bias-after-pool reordering exact.
    """
    Pt = np.zeros((H * W, s1 * s2), dtype=np.float32)
    for i in range(s1):
        hs = (i * H) // s1
        he = -((-(i + 1) * H) // s1)          # ceil((i+1)*H / s1)
        for j in range(s2):
            ws = (j * W) // s2
            we = -((-(j + 1) * W) // s2)      # ceil((j+1)*W / s2)
            cnt = (he - hs) * (we - ws)
            for h in range(hs, he):
                for w in range(ws, we):
                    Pt[h * W + w, i * s2 + j] = 1.0 / cnt
    return jnp.asarray(Pt)


def _pick_hw_tile(HW, Cin, dtype_bytes=4, vmem_budget_bytes=4 * 1024 * 1024):
    """Largest multiple-of-128 divisor of HW whose (Cin, tile) input window fits
    ~vmem_budget_bytes (so the double-buffered stream stays small even for large
    Cin).  Falls back to the full HW when HW isn't 128-aligned (single tile)."""
    if HW % 128 != 0:
        return HW
    cap = max(128, (vmem_budget_bytes // max(1, Cin * dtype_bytes)) // 128 * 128)
    cap = min(cap, HW)
    for cand in range(cap, 0, -128):
        if HW % cand == 0:
            return cand
    return HW


def convap_forward(x_nchw, weight, bias, s1=2, s2=2):
    """ConvAP forward.

    x_nchw: (B, Cin, H, W); weight: (Cout, Cin) or (Cout, Cin, 1, 1); bias: (Cout,).
    Returns (B, Cout*s1*s2), L2-normalized, in torch flatten (channel-major) order.
    """
    B, Cin, H, W = x_nchw.shape
    w2d = jnp.asarray(weight).reshape(weight.shape[0], -1)   # (Cout, Cin)
    assert w2d.shape[1] == Cin
    Cout = w2d.shape[0]
    S = s1 * s2
    HW = H * W

    x_chw = x_nchw.reshape(B, Cin, HW)            # free reshape of NCHW, NO transpose
    Pt = _build_pool_matrix_t(H, W, s1, s2)       # (HW, S)
    bias2d = jnp.asarray(bias).reshape(Cout, 1)

    thw = _pick_hw_tile(HW, Cin, dtype_bytes=jnp.dtype(x_nchw.dtype).itemsize)
    num_t = HW // thw

    out = pl.pallas_call(
        _convap_kernel,
        out_shape=jax.ShapeDtypeStruct((B, Cout, S), x_nchw.dtype),
        grid=(B, num_t),
        in_specs=[
            pl.BlockSpec((1, Cin, thw), lambda b, t: (b, 0, t)),   # lane-dense input tile
            pl.BlockSpec((thw, S), lambda b, t: (t, 0)),           # pooling matrix tile
            pl.BlockSpec((Cout, Cin), lambda b, t: (0, 0)),        # conv weight (resident)
            pl.BlockSpec((Cout, 1), lambda b, t: (0, 0)),          # conv bias (resident)
        ],
        out_specs=pl.BlockSpec((1, Cout, S), lambda b, t: (b, 0, 0)),
        scratch_shapes=[pltpu.VMEM((Cin, S), jnp.float32)],
        compiler_params=pltpu.CompilerParams(
            dimension_semantics=("parallel", "arbitrary"),
            vmem_limit_bytes=32 * 1024 * 1024,
        ),
    )(x_chw, Pt, w2d, bias2d)

    # (B, Cout, s1*s2) is already torch's channel-major flatten order -> free reshape.
    return out.reshape(B, Cout * S)


def _reference(x_nchw, weight, bias, s1=2, s2=2):
    """Pure-JAX reference mirroring the PyTorch module (conv -> pool -> flatten -> normalize)."""
    B, Cin, H, W = x_nchw.shape
    w2d = jnp.asarray(weight).reshape(weight.shape[0], -1)
    Cout = w2d.shape[0]
    y = jnp.einsum("oc,bchw->bohw", w2d, x_nchw) + bias[None, :, None, None]
    Pt = _build_pool_matrix_t(H, W, s1, s2)                            # (HW, S)
    pooled = jnp.einsum("bot,ts->bos", y.reshape(B, Cout, H * W), Pt)  # (B, Cout, S)
    flat = pooled.reshape(B, Cout * s1 * s2)
    n = jnp.maximum(jnp.sqrt(jnp.sum(flat * flat, axis=1, keepdims=True)), 1e-12)
    return flat / n


if __name__ == "__main__":
    # Small shapes consistent with the module.
    B, Cin, H, W = 2, 4, 16, 16
    Cout, s1, s2 = 32, 2, 2

    key = jax.random.PRNGKey(0)
    kx, kw, kb = jax.random.split(key, 3)
    x = jax.random.normal(kx, (B, Cin, H, W), dtype=jnp.float32)
    # torch Conv2d(1x1) weight layout: (Cout, Cin, 1, 1)
    weight = 0.1 * jax.random.normal(kw, (Cout, Cin, 1, 1), dtype=jnp.float32)
    bias = 0.05 * jax.random.normal(kb, (Cout,), dtype=jnp.float32)

    out = convap_forward(x, weight, bias, s1=s1, s2=s2)
    out = jax.block_until_ready(out)

    ref = _reference(x, weight, bias, s1=s1, s2=s2)
    assert out.shape == (B, Cout * s1 * s2)
    assert jnp.allclose(out, ref, atol=1e-5, rtol=1e-5), float(jnp.max(jnp.abs(out - ref)))

    print("KERNEL_OK")
</pallas_src>

<mosaic_0001>
module attributes {stable_mosaic.version = 11 : i64} {
  func.func @_convap_kernel(%arg0: i32, %arg1: i32, %arg2: memref<1x4x256xf32, #tpu.memory_space<vmem>>, %arg3: memref<256x4xf32, #tpu.memory_space<vmem>>, %arg4: memref<32x4xf32, #tpu.memory_space<vmem>>, %arg5: memref<32x1xf32, #tpu.memory_space<vmem>>, %arg6: memref<1x32x4xf32, #tpu.memory_space<vmem>>, %arg7: memref<4x4xf32, #tpu.memory_space<vmem>>) attributes {dimension_semantics = [#tpu.dimension_semantics<parallel>, #tpu.dimension_semantics<arbitrary>], iteration_bounds = array<i64: 2, 1>, scalar_prefetch = 0 : i64, scratch_operands = 1 : i64, tpu.core_type = #tpu.core_type<tc>, window_params = [{transform_indices = @transform_0, window_bounds = array<i64: 1, 4, 256>}, {transform_indices = @transform_1, window_bounds = array<i64: 256, 4>}, {pipeline_mode = #tpu.pipeline_mode<synchronous>, transform_indices = @transform_2, window_bounds = array<i64: 32, 4>}, {pipeline_mode = #tpu.pipeline_mode<synchronous>, transform_indices = @transform_3, window_bounds = array<i64: 32, 1>}, {transform_indices = @transform_4, window_bounds = array<i64: 1, 32, 4>}]} {
    %c0_i32 = arith.constant 0 : i32
    %0 = arith.cmpi eq, %arg1, %c0_i32 : i32
    %1 = arith.extui %0 : i1 to i32
    %c0_i32_0 = arith.constant 0 : i32
    %2 = arith.cmpi ne, %1, %c0_i32_0 : i32
    scf.if %2 {
      %cst_11 = arith.constant 0.000000e+00 : f32
      %13 = vector.broadcast %cst_11 : f32 to vector<4x4xf32>
      %c0_12 = arith.constant 0 : index
      %c0_13 = arith.constant 0 : index
      %14 = vector.load %arg7[%c0_12, %c0_13] : memref<4x4xf32, #tpu.memory_space<vmem>>, vector<4x4xf32>
      tpu.vector_store %arg7[%c0_12, %c0_13], %13 {strides = array<i32>} : memref<4x4xf32, #tpu.memory_space<vmem>>, vector<4x4xf32>,
    } else {
    }
    %c0 = arith.constant 0 : index
    %c0_1 = arith.constant 0 : index
    %3 = vector.load %arg7[%c0, %c0_1] : memref<4x4xf32, #tpu.memory_space<vmem>>, vector<4x4xf32>
    %c0_2 = arith.constant 0 : index
    %c0_3 = arith.constant 0 : index
    %c0_4 = arith.constant 0 : index
    %4 = vector.load %arg2[%c0_2, %c0_3, %c0_4] : memref<1x4x256xf32, #tpu.memory_space<vmem>>, vector<1x4x256xf32>
    %5 = vector.shape_cast %4 : vector<1x4x256xf32> to vector<4x256xf32>
    %c0_5 = arith.constant 0 : index
    %c0_6 = arith.constant 0 : index
    %6 = vector.load %arg3[%c0_5, %c0_6] : memref<256x4xf32, #tpu.memory_space<vmem>>, vector<256x4xf32>
    %cst = arith.constant dense<0.000000e+00> : vector<4x4xf32>
    %7 = tpu.matmul %5, %6, %cst {dimension_numbers = #tpu.dot_dimension_numbers<[1], [0], [0], [1], [0, 0, 1, 1], [], []>} : vector<4x256xf32>, vector<256x4xf32>, vector<4x4xf32> -> vector<4x4xf32>
    %8 = arith.addf %3, %7 : vector<4x4xf32>
    %c0_7 = arith.constant 0 : index
    %c0_8 = arith.constant 0 : index
    %9 = vector.load %arg7[%c0_7, %c0_8] : memref<4x4xf32, #tpu.memory_space<vmem>>, vector<4x4xf32>
    tpu.vector_store %arg7[%c0_7, %c0_8], %8 {strides = array<i32>} : memref<4x4xf32, #tpu.memory_space<vmem>>, vector<4x4xf32>,
    %c0_i32_9 = arith.constant 0 : i32
    %10 = arith.cmpi eq, %arg1, %c0_i32_9 : i32
    %11 = arith.extui %10 : i1 to i32
    %c0_i32_10 = arith.constant 0 : i32
    %12 = arith.cmpi ne, %11, %c0_i32_10 : i32
    scf.if %12 {
      %c0_11 = arith.constant 0 : index
      %c0_12 = arith.constant 0 : index
      %13 = vector.load %arg4[%c0_11, %c0_12] : memref<32x4xf32, #tpu.memory_space<vmem>>, vector<32x4xf32>
      %c0_13 = arith.constant 0 : index
      %c0_14 = arith.constant 0 : index
      %14 = vector.load %arg7[%c0_13, %c0_14] : memref<4x4xf32, #tpu.memory_space<vmem>>, vector<4x4xf32>
      %cst_15 = arith.constant dense<0.000000e+00> : vector<32x4xf32>
      %15 = tpu.matmul %13, %14, %cst_15 {dimension_numbers = #tpu.dot_dimension_numbers<[1], [0], [0], [1], [0, 0, 1, 1], [], []>} : vector<32x4xf32>, vector<4x4xf32>, vector<32x4xf32> -> vector<32x4xf32>
      %c0_16 = arith.constant 0 : index
      %c0_17 = arith.constant 0 : index
      %16 = vector.load %arg5[%c0_16, %c0_17] : memref<32x1xf32, #tpu.memory_space<vmem>>, vector<32x1xf32>
      %17 = vector.broadcast %16 : vector<32x1xf32> to vector<32x4xf32>
      %18 = arith.addf %15, %17 : vector<32x4xf32>
      %19 = arith.mulf %18, %18 : vector<32x4xf32>
      %20 = vector.shape_cast %19 : vector<32x4xf32> to vector<1x32x4xf32>
      %cst_18 = arith.constant dense<0.000000e+00> : vector<1xf32>
      %21 = vector.multi_reduction <add>, %20, %cst_18 [1, 2] : vector<1x32x4xf32> to vector<1xf32>
      %22 = vector.shape_cast %21 : vector<1xf32> to vector<1x1x1xf32>
      %23 = vector.extract %22[0, 0, 0] : f32 from vector<1x1x1xf32>
      %cst_19 = arith.constant 1.000000e-24 : f32
      %24 = arith.maximumf %23, %cst_19 : f32
      %25 = math.rsqrt %24 : f32
      %26 = vector.broadcast %25 : f32 to vector<32x4xf32>
      %27 = arith.mulf %18, %26 : vector<32x4xf32>
      %c0_20 = arith.constant 0 : index
      %c0_21 = arith.constant 0 : index
      %c0_22 = arith.constant 0 : index
      %28 = vector.load %arg6[%c0_20, %c0_21, %c0_22] : memref<1x32x4xf32, #tpu.memory_space<vmem>>, vector<1x32x4xf32>
      %29 = vector.shape_cast %28 : vector<1x32x4xf32> to vector<32x4xf32>
      %30 = vector.shape_cast %27 : vector<32x4xf32> to vector<1x32x4xf32>
      tpu.vector_store %arg6[%c0_20, %c0_21, %c0_22], %30 {strides = array<i32>} : memref<1x32x4xf32, #tpu.memory_space<vmem>>, vector<1x32x4xf32>,
    } else {
    }
    return
  }
  func.func @transform_0(%arg0: i32, %arg1: i32) -> (i32, i32, i32) {
    %c0_i32 = arith.constant 0 : i32
    %c0_i32_0 = arith.constant 0 : i32
    return %arg0, %c0_i32, %arg1 : i32, i32, i32
  }
  func.func @transform_1(%arg0: i32, %arg1: i32) -> (i32, i32) {
    %c0_i32 = arith.constant 0 : i32
    %c0_i32_0 = arith.constant 0 : i32
    return %arg1, %c0_i32 : i32, i32
  }
  func.func @transform_2(%arg0: i32, %arg1: i32) -> (i32, i32) {
    %c0_i32 = arith.constant 0 : i32
    %c0_i32_0 = arith.constant 0 : i32
    %c0_i32_1 = arith.constant 0 : i32
    return %c0_i32, %c0_i32_0 : i32, i32
  }
  func.func @transform_3(%arg0: i32, %arg1: i32) -> (i32, i32) {
    %c0_i32 = arith.constant 0 : i32
    %c0_i32_0 = arith.constant 0 : i32
    %c0_i32_1 = arith.constant 0 : i32
    return %c0_i32, %c0_i32_0 : i32, i32
  }
  func.func @transform_4(%arg0: i32, %arg1: i32) -> (i32, i32, i32) {
    %c0_i32 = arith.constant 0 : i32
    %c0_i32_0 = arith.constant 0 : i32
    %c0_i32_1 = arith.constant 0 : i32
    return %arg0, %c0_i32, %c0_i32_0 : i32, i32, i32
  }
}

</mosaic_0001>

<llo_original>
// kernel: tpu_custom_call.1
$region0: #{tpu_custom_call.1}
  #allocation0 [shape = 'u32[]', space=smem, size = 0x4, offset = 0x4, fixed_abs, tag = 'smem constant byte address 0x4 - core index']
  #allocation1 [shape = 'u32[144,128]{1,0:T(1,128)}', space=vmem, size = 0x12000, scoped, tag = 'internal scratch']
  #allocation2 [shape = 'f32[4,4]{1,0:T(4,128)}', space=vmem, size = 0x800, scoped, tag = 'scratch operand']
  %s0 = inlined_call_operand.vmem [shape: f32[2,4,256], index: 0, kind: input, shape index: {}]
  %s1 = inlined_call_operand.vmem [shape: f32[256,4], index: 1, kind: input, shape index: {}]
  %s2 = inlined_call_operand.vmem [shape: f32[32,4], index: 2, kind: input, shape index: {}]
  %s3 = inlined_call_operand.vmem [shape: f32[32,1], index: 3, kind: input, shape index: {}]
  %s4 = inlined_call_operand.vmem [shape: f32[2,32,4], index: 4, kind: output, shape index: {}]
  %s5 = sld [smem:[#allocation0]]
  $region57: #{tpu_custom_call.1} parent=0
    _
  %s7 = ssub.s32 1, %s5
  %s8 = scalar_select 0, %s7, %s5
  loop: start=0, step=1, limit=4
  $region2: #{tpu_custom_call.1} parent=0 // loop_pre_header
    _
  $region3: #{tpu_custom_call.1} parent=0 // loop_header
    %s10 = sphi 0, %s14
    %p11 = scmp.ge.s32.totalorder %s10, 4
    %s17 = sphi 0, %s29
    %s18 = sphi 0, %s25
    %s19 = sphi 0, %s17
    %s20 = sphi 0, %s18
    %s21 = sphi 0, %s19
    %s22 = sphi 0, %s20
    %s34 = sphi 0, %s36
    %s37 = sphi 0, %s34
    %s38 = sphi 0, %s37
    %s54 = sphi 0, %s38
    %s60 = sphi 0, %s62
    %s63 = sphi 0, %s60
    %s64 = sphi 0, %s63
    %s80 = sphi 0, %s64
    %s84 = sphi 0, %s84
    %s86 = sphi 0, %s84
    %s87 = sphi 0, %s86
    %s101 = sphi 0, %s87
    %s105 = sphi 0, %s105
    %s107 = sphi 0, %s105
    %s108 = sphi 0, %s107
    %s122 = sphi 0, %s108
    %s128 = sphi 0, %s130
    %s131 = sphi 0, %s128
    %s132 = sphi 0, %s131
    %s148 = sphi 0, %s132
  $region4: #{tpu_custom_call.1} parent=0 // loop_header_branch
    %13 = sbr.rel (%p11) target = $region8
  $region5: #{tpu_custom_call.1} parent=0 // loop_body
    %s15 = ssub.s32 %s10, 1
    %s16 = ssub.s32 %s10, 2
    %s23 = sadd.s32 1, %s18
    %p24 = scmp.ge.s32.totalorder %s23, 1
    %s25 = scalar_select %p24, 0, %s23
    %s26 = sadd.s32 1, %s17
    %s27 = scalar_select %p24, %s26, %s17
    %p28 = scmp.ge.s32.totalorder %s27, 2
    %s29 = scalar_select %p28, 0, %s27
    %s30 = ssub.s32 %s17, %s29
    %s31 = ssub.s32 %s18, %s25
    %s32 = sor.u32 %s30, %s31
    %p33 = scmp.eq.s32.totalorder %s32, 0
    %s35 = sadd.s32 %s34, 1
    %s36 = scalar_select %p33, %s34, %s35
    %p39 = pneg %p33
    %p40 = scmp.eq.s32.totalorder %s10, 1
    %p41 = por %p39, %p40
    %p42 = scmp.ne.s32.totalorder %s34, %s37
    %p43 = scmp.eq.s32.totalorder %s10, 0
    %p44 = por %p42, %p43
    %p45 = scmp.ne.s32.totalorder %s34, %s37
    %p46 = scmp.eq.s32.totalorder %s15, 1
    %p47 = por %p45, %p46
    %p48 = scmp.ne.s32.totalorder %s37, %s38
    %p49 = scmp.eq.s32.totalorder %s15, 0
    %p50 = por %p48, %p49
    %p51 = scmp.ne.s32.totalorder %s37, %s38
    %p52 = scmp.eq.s32.totalorder %s16, 1
    %p53 = por %p51, %p52
    %p55 = scmp.ne.s32.totalorder %s38, %s54
    %p56 = scmp.eq.s32.totalorder %s16, 0
    %p57 = por %p55, %p56
    %s58 = ssub.s32 %s18, %s25
    %p59 = scmp.eq.s32.totalorder %s58, 0
    %s61 = sadd.s32 %s60, 1
    %s62 = scalar_select %p59, %s60, %s61
    %p65 = pneg %p59
    %p66 = scmp.eq.s32.totalorder %s10, 1
    %p67 = por %p65, %p66
    %p68 = scmp.ne.s32.totalorder %s60, %s63
    %p69 = scmp.eq.s32.totalorder %s10, 0
    %p70 = por %p68, %p69
    %p71 = scmp.ne.s32.totalorder %s60, %s63
    %p72 = scmp.eq.s32.totalorder %s15, 1
    %p73 = por %p71, %p72
    %p74 = scmp.ne.s32.totalorder %s63, %s64
    %p75 = scmp.eq.s32.totalorder %s15, 0
    %p76 = por %p74, %p75
    %p77 = scmp.ne.s32.totalorder %s63, %s64
    %p78 = scmp.eq.s32.totalorder %s16, 1
    %p79 = por %p77, %p78
    %p81 = scmp.ne.s32.totalorder %s64, %s80
    %p82 = scmp.eq.s32.totalorder %s16, 0
    %p83 = por %p81, %p82
    %s85 = sadd.s32 %s84, 1
    %p88 = scmp.eq.s32.totalorder %s10, 1
    %p89 = scmp.ne.s32.totalorder %s84, %s86
    %p90 = scmp.eq.s32.totalorder %s10, 0
    %p91 = por %p89, %p90
    %p92 = scmp.ne.s32.totalorder %s84, %s86
    %p93 = scmp.eq.s32.totalorder %s15, 1
    %p94 = por %p92, %p93
    %p95 = scmp.ne.s32.totalorder %s86, %s87
    %p96 = scmp.eq.s32.totalorder %s15, 0
    %p97 = por %p95, %p96
    %p98 = scmp.ne.s32.totalorder %s86, %s87
    %p99 = scmp.eq.s32.totalorder %s16, 1
    %p100 = por %p98, %p99
    %p102 = scmp.ne.s32.totalorder %s87, %s101
    %p103 = scmp.eq.s32.totalorder %s16, 0
    %p104 = por %p102, %p103
    %s106 = sadd.s32 %s105, 1
    %p109 = scmp.eq.s32.totalorder %s10, 1
    %p110 = scmp.ne.s32.totalorder %s105, %s107
    %p111 = scmp.eq.s32.totalorder %s10, 0
    %p112 = por %p110, %p111
    %p113 = scmp.ne.s32.totalorder %s105, %s107
    %p114 = scmp.eq.s32.totalorder %s15, 1
    %p115 = por %p113, %p114
    %p116 = scmp.ne.s32.totalorder %s107, %s108
    %p117 = scmp.eq.s32.totalorder %s15, 0
    %p118 = por %p116, %p117
    %p119 = scmp.ne.s32.totalorder %s107, %s108
    %p120 = scmp.eq.s32.totalorder %s16, 1
    %p121 = por %p119, %p120
    %p123 = scmp.ne.s32.totalorder %s108, %s122
    %p124 = scmp.eq.s32.totalorder %s16, 0
    %p125 = por %p123, %p124
    %s126 = ssub.s32 %s17, %s29
    %p127 = scmp.eq.s32.totalorder %s126, 0
    %s129 = sadd.s32 %s128, 1
    %s130 = scalar_select %p127, %s128, %s129
    %p133 = pneg %p127
    %p134 = scmp.eq.s32.totalorder %s10, 1
    %p135 = por %p133, %p134
    %p136 = scmp.ne.s32.totalorder %s128, %s131
    %p137 = scmp.eq.s32.totalorder %s10, 0
    %p138 = por %p136, %p137
    %p139 = scmp.ne.s32.totalorder %s128, %s131
    %p140 = scmp.eq.s32.totalorder %s15, 1
    %p141 = por %p139, %p140
    %p142 = scmp.ne.s32.totalorder %s131, %s132
    %p143 = scmp.eq.s32.totalorder %s15, 0
    %p144 = por %p142, %p143
    %p145 = scmp.ne.s32.totalorder %s131, %s132
    %p146 = scmp.eq.s32.totalorder %s16, 1
    %p147 = por %p145, %p146
    %p149 = scmp.ne.s32.totalorder %s132, %s148
    %p150 = scmp.eq.s32.totalorder %s16, 0
    %p151 = por %p149, %p150
    %p152 = scmp.le.s32.totalorder 1, %s10
    %p153 = scmp.lt.s32.totalorder %s10, 3
    %p154 = pnand %p152, %p153
    %p155 = pneg %p154
    // Predicated region
    $region9: #{tpu_custom_call.1} parent=5 // pred_check
      _
    $region10: #{tpu_custom_call.1} parent=5 // pred_check_branch
      %157 = sbr.rel (%p154) target = $region12
    $region11: #{tpu_custom_call.1} parent=5 // pred_region
      %s158 = ssub.s32 %s10, 1
      // Predicated region
      $region13: #{tpu_custom_call.1} parent=11 // pred_check
        %p159 = pneg %p76
      $region14: #{tpu_custom_call.1} parent=11 // pred_check_branch
        %161 = sbr.rel (%p159) target = $region16
      $region15: #{tpu_custom_call.1} parent=11 // pred_region
        %s162 = smul.u32 32, %s20
        %p163 = scmp.lt.s32.totalorder %s162, 31
        %s164 = scalar_select %p163, %s162, 31
        %s165 = smul.addr %s164, 8
        %s166 = scalar_lea.vmem %s1, %s165
        %s167 = smul.u32 32, %s20
      $region16: #{tpu_custom_call.1} parent=11 // pred_fallthru
        _
      // Predicated region
      $region17: #{tpu_custom_call.1} parent=11 // pred_check
        %p168 = pneg %p97
      $region18: #{tpu_custom_call.1} parent=11 // pred_check_branch
        %170 = sbr.rel (%p168) target = $region20
      $region19: #{tpu_custom_call.1} parent=11 // pred_region
        _
      $region20: #{tpu_custom_call.1} parent=11 // pred_fallthru
        _
      // Predicated region
      $region21: #{tpu_custom_call.1} parent=11 // pred_check
        %p171 = pneg %p118
      $region22: #{tpu_custom_call.1} parent=11 // pred_check_branch
        %173 = sbr.rel (%p171) target = $region24
      $region23: #{tpu_custom_call.1} parent=11 // pred_region
        _
      $region24: #{tpu_custom_call.1} parent=11 // pred_fallthru
        _
    $region12: #{tpu_custom_call.1} parent=5 // pred_fallthru
      _
    %p174 = scmp.lt.s32.totalorder %s10, 2
    // Predicated region
    $region25: #{tpu_custom_call.1} parent=5 // pred_check
      %p175 = pneg %p174
    $region26: #{tpu_custom_call.1} parent=5 // pred_check_branch
      %177 = sbr.rel (%p175) target = $region28
    $region27: #{tpu_custom_call.1} parent=5 // pred_region
      // Predicated region
      $region29: #{tpu_custom_call.1} parent=27 // pred_check
        %p178 = pneg %p44
      $region30: #{tpu_custom_call.1} parent=27 // pred_check_branch
        %180 = sbr.rel (%p178) target = $region32
      $region31: #{tpu_custom_call.1} parent=27 // pred_region
        %s181 = smul.u32 2, %s18
        %p182 = scmp.lt.s32.totalorder %s17, 1
        %s183 = scalar_select %p182, %s17, 1
        %p184 = scmp.lt.s32.totalorder %s181, 1
        %s185 = scalar_select %p184, %s181, 1
        %s186 = smul.addr %s183, 2
        %s187 = sadd.s32 %s185, %s186
        %s188 = smul.addr %s187, 4
        %s189 = scalar_lea.vmem %s0, %s188
        %s190 = smul.u32 2, %s18
      $region32: #{tpu_custom_call.1} parent=27 // pred_fallthru
        _
    $region28: #{tpu_custom_call.1} parent=5 // pred_fallthru
      _
    %p191 = scmp.le.s32.totalorder 1, %s10
    %p192 = scmp.lt.s32.totalorder %s10, 3
    %p193 = pnand %p191, %p192
    %p194 = pneg %p193
    // Predicated region
    $region33: #{tpu_custom_call.1} parent=5 // pred_check
      _
    $region34: #{tpu_custom_call.1} parent=5 // pred_check_branch
      %196 = sbr.rel (%p193) target = $region36
    $region35: #{tpu_custom_call.1} parent=5 // pred_region
      %s197 = ssub.s32 %s10, 1
      %s198 = smul.u32 2, %s20
      %p199 = scmp.lt.s32.totalorder %s19, 1
      %s200 = scalar_select %p199, %s19, 1
      %p201 = scmp.lt.s32.totalorder %s198, 1
      %s202 = scalar_select %p201, %s198, 1
      %s203 = smul.addr %s200, 2
      %s204 = sadd.s32 %s202, %s203
      %s205 = smul.addr %s204, 4
      %s206 = scalar_lea.vmem %s0, %s205
      %p207 = pneg %p50
      %p208 = pneg %p47
      %s209 = smul.u32 32, %s20
      %p210 = scmp.lt.s32.totalorder %s209, 31
      %s211 = scalar_select %p210, %s209, 31
      %s212 = smul.addr %s211, 8
      %s213 = scalar_lea.vmem %s1, %s212
      %p214 = pneg %p76
      %p215 = pneg %p73
      %p216 = pneg %p97
      %p217 = pneg %p94
      %p218 = pneg %p118
      %p219 = pneg %p115
      %p220 = pneg %p144
      %p221 = pneg %p141
      %p222 = scmp.lt.s32.totalorder %s19, 1
      %s223 = scalar_select %p222, %s19, 1
      %s224 = smul.addr %s223, 4
      %s225 = smul.addr %s224, 8
      %s226 = scalar_lea.vmem %s4, %s225
      %s227 = smul.u32 2, %s20
      %p228 = scmp.lt.s32.totalorder %s19, 1
      %s229 = scalar_select %p228, %s19, 1
      %p230 = scmp.lt.s32.totalorder %s227, 1
      %s231 = scalar_select %p230, %s227, 1
      %s232 = smul.addr %s229, 2
      %s233 = sadd.s32 %s231, %s232
      %s234 = smul.addr %s233, 4
      %s235 = scalar_lea.vmem %s0, %s234
      %s236 = smul.u32 2, %s20
      %s237 = smul.u32 32, %s20
      %p238 = scmp.lt.s32.totalorder %s237, 31
      %s239 = scalar_select %p238, %s237, 31
      %s240 = smul.addr %s239, 8
      %s241 = scalar_lea.vmem %s1, %s240
      %s242 = smul.u32 32, %s20
      %p243 = scmp.lt.s32.totalorder %s19, 1
      %s244 = scalar_select %p243, %s19, 1
      %s245 = smul.addr %s244, 4
      %s246 = smul.addr %s245, 8
      %s247 = scalar_lea.vmem %s4, %s246
      %p248 = scmp.eq.s32.totalorder %s20, 0
      // Predicated region
      $region37: #{tpu_custom_call.1} parent=35 // pred_check
        %p249 = pneg %p248
      $region38: #{tpu_custom_call.1} parent=35 // pred_check_branch
        %251 = sbr.rel (%p249) target = $region40
      $region39: #{tpu_custom_call.1} parent=35 // pred_region
        %vm252 = vcmask 27648
        %253 = vst.msk [vmem:[#allocation2] sm:$0xf] %vm252, 0.0
      $region40: #{tpu_custom_call.1} parent=35 // pred_fallthru
        _
      %v254 = vld [vmem:[#allocation2] sm:$0xf]
      %v255 = vld [vmem:[%s235] sm:$0xff]
      %v256 = vld [vmem:[%s241] sm:$0xff]
      %v257 = vld [vmem:[%s241 + $0x8] sm:$0xff]
      %v258 = vld [vmem:[%s241 + $0x10] sm:$0xff]
      %v259 = vld [vmem:[%s241 + $0x18] sm:$0xff]
      %v260 = vld [vmem:[%s241 + $0x20] sm:$0xff]
      %v261 = vld [vmem:[%s241 + $0x28] sm:$0xff]
      %v262 = vld [vmem:[%s241 + $0x30] sm:$0xff]
      %v263 = vld [vmem:[%s241 + $0x38] sm:$0xff]
      %v264 = vld [vmem:[%s241 + $0x40] sm:$0xff]
      %v265 = vld [vmem:[%s241 + $0x48] sm:$0xff]
      %v266 = vld [vmem:[%s241 + $0x50] sm:$0xff]
      %v267 = vld [vmem:[%s241 + $0x58] sm:$0xff]
      %v268 = vld [vmem:[%s241 + $0x60] sm:$0xff]
      %v269 = vld [vmem:[%s241 + $0x68] sm:$0xff]
      %v270 = vld [vmem:[%s241 + $0x70] sm:$0xff]
      %v271 = vld [vmem:[%s241 + $0x78] sm:$0xff]
      %v272 = vld [vmem:[%s241 + $0x80] sm:$0xff]
      %v273 = vld [vmem:[%s241 + $0x88] sm:$0xff]
      %v274 = vld [vmem:[%s241 + $0x90] sm:$0xff]
      %v275 = vld [vmem:[%s241 + $0x98] sm:$0xff]
      %v276 = vld [vmem:[%s241 + $0xa0] sm:$0xff]
      %v277 = vld [vmem:[%s241 + $0xa8] sm:$0xff]
      %v278 = vld [vmem:[%s241 + $0xb0] sm:$0xff]
      %v279 = vld [vmem:[%s241 + $0xb8] sm:$0xff]
      %v280 = vld [vmem:[%s241 + $0xc0] sm:$0xff]
      %v281 = vld [vmem:[%s241 + $0xc8] sm:$0xff]
      %v282 = vld [vmem:[%s241 + $0xd0] sm:$0xff]
      %v283 = vld [vmem:[%s241 + $0xd8] sm:$0xff]
      %v284 = vld [vmem:[%s241 + $0xe0] sm:$0xff]
      %v285 = vld [vmem:[%s241 + $0xe8] sm:$0xff]
      %v286 = vld [vmem:[%s241 + $0xf0] sm:$0xff]
      %v287 = vld [vmem:[%s241 + $0xf8] sm:$0xff]
      %v289 = vcombine.high %v255, %v255
      %291 = vmatprep.subr.mxu0 0.0
      %292 = vmatpush1.msra.mxu0 %v256
      %293 = vmatprep.subr.mxu0 0.0
      %294 = vmatpush1.msra.mxu0 %v257
      %295 = vmatprep.subr.mxu0 0.0
      %296 = vmatpush1.msra.mxu0 %v258
      %297 = vmatprep.subr.mxu0 0.0
      %298 = vmatpush1.msra.mxu0 %v259
      %299 = vmatprep.subr.mxu0 0.0
      %300 = vmatpush1.msra.mxu0 %v260
      %301 = vmatprep.subr.mxu0 0.0
      %302 = vmatpush1.msra.mxu0 %v261
      %303 = vmatprep.subr.mxu0 0.0
      %304 = vmatpush1.msra.mxu0 %v262
      %305 = vmatprep.subr.mxu0 0.0
      %306 = vmatpush1.msra.mxu0 %v263
      %307 = vmatprep.subr.mxu0 0.0
      %308 = vmatpush1.msra.mxu0 %v264
      %309 = vmatprep.subr.mxu0 0.0
      %310 = vmatpush1.msra.mxu0 %v265
      %311 = vmatprep.subr.mxu0 0.0
      %312 = vmatpush1.msra.mxu0 %v266
      %313 = vmatprep.subr.mxu0 0.0
      %314 = vmatpush1.msra.mxu0 %v267
      %315 = vmatprep.subr.mxu0 0.0
      %316 = vmatpush1.msra.mxu0 %v268
      %317 = vmatprep.subr.mxu0 0.0
      %318 = vmatpush1.msra.mxu0 %v269
      %319 = vmatprep.subr.mxu0 0.0
      %320 = vmatpush1.msra.mxu0 %v270
      %321 = vmatprep.subr.mxu0 0.0
      %322 = vmatpush1.msra.mxu0 %v271
      %323 = vmatprep.subr.mxu0 0.0
      %324 = vmatpush1.msra.mxu0 %v272
      %325 = vmatprep.subr.mxu0 0.0
      %326 = vmatpush1.msra.mxu0 %v273
      %327 = vmatprep.subr.mxu0 0.0
      %328 = vmatpush1.msra.mxu0 %v274
      %329 = vmatprep.subr.mxu0 0.0
      %330 = vmatpush1.msra.mxu0 %v275
      %331 = vmatprep.subr.mxu0 0.0
      %332 = vmatpush1.msra.mxu0 %v276
      %333 = vmatprep.subr.mxu0 0.0
      %334 = vmatpush1.msra.mxu0 %v277
      %335 = vmatprep.subr.mxu0 0.0
      %336 = vmatpush1.msra.mxu0 %v278
      %337 = vmatprep.subr.mxu0 0.0
      %338 = vmatpush1.msra.mxu0 %v279
      %339 = vmatprep.subr.mxu0 0.0
      %340 = vmatpush1.msra.mxu0 %v280
      %341 = vmatprep.subr.mxu0 0.0
      %342 = vmatpush1.msra.mxu0 %v281
      %343 = vmatprep.subr.mxu0 0.0
      %344 = vmatpush1.msra.mxu0 %v282
      %345 = vmatprep.subr.mxu0 0.0
      %346 = vmatpush1.msra.mxu0 %v283
      %347 = vmatprep.subr.mxu0 0.0
      %348 = vmatpush1.msra.mxu0 %v284
      %349 = vmatprep.subr.mxu0 0.0
      %350 = vmatpush1.msra.mxu0 %v285
      %351 = vmatprep.subr.mxu0 0.0
      %352 = vmatpush1.msra.mxu0 %v286
      %353 = vmatprep.subr.mxu0 0.0
      %354 = vmatpush1.msra.mxu0 %v287
      %355 = vmatprep.mubr.f32.mxu0 %v289
      %356 = vmatmul.mubr.f32.gmra.mrb[0].mxu0 %v255
      %v357 = vpop.f32.mrb[0].mxu0
      %v358 = vadd.f32 0.0, %v357
      %v359 = vpop.f32.mrb[0].mxu0
      %360 = vdwg.mxu0
      %v361 = vadd.f32 %v254, %v358
      %vm362 = vcmask 27648
      %363 = vst.msk [vmem:[#allocation2] sm:$0xf] %vm362, %v361
      // Predicated region
      $region41: #{tpu_custom_call.1} parent=35 // pred_check
        %p364 = pneg %p248
      $region42: #{tpu_custom_call.1} parent=35 // pred_check_branch
        %366 = sbr.rel (%p364) target = $region44
      $region43: #{tpu_custom_call.1} parent=35 // pred_region
        %v367 = vld [vmem:[%s2] sm:$0xff]
        %v368 = vld [vmem:[%s2 + $0x8] sm:$0xff]
        %v369 = vld [vmem:[%s2 + $0x10] sm:$0xff]
        %v370 = vld [vmem:[%s2 + $0x18] sm:$0xff]
        %v371 = vld [vmem:[#allocation2] sm:$0xf]
        %v372 = vld [vmem:[%s3] sm:$0xff]
        %v373 = vld [vmem:[%s3 + $0x8] sm:$0xff]
        %v374 = vld [vmem:[%s3 + $0x10] sm:$0xff]
        %v375 = vld [vmem:[%s3 + $0x18] sm:$0xff]
        %377 = vset.pattern.permute.xlu0 0
        %378 = vperm.xlu0 %377, %v372
        %v379 = vpop.permute.xlu0 %378
        %382 = vset.pattern.permute.xlu0 0
        %383 = vperm.xlu0 %382, %v373
        %v384 = vpop.permute.xlu0 %383
        %387 = vset.pattern.permute.xlu0 0
        %388 = vperm.xlu0 %387, %v374
        %v389 = vpop.permute.xlu0 %388
        %392 = vset.pattern.permute.xlu0 0
        %393 = vperm.xlu0 %392, %v375
        %v394 = vpop.permute.xlu0 %393
        %vm396 = vcmask 31744
        %v398 = vsel %vm396, %v367, 0
        %v401 = vsel %vm396, %v368, 0
        %v404 = vsel %vm396, %v369, 0
        %v407 = vsel %vm396, %v370, 0
        %vm409 = vcmask 1043456
        %v411 = vsel %vm409, %v371, 0
        %413 = vmatprep.subr.mxu0 0.0
        %414 = vmatpush1.msra.mxu0 %v411
        %415 = vmatprep.subr.mxu0 0.0
        %416 = vmatpush1.msra.mxu0 0.0
        %417 = vmatprep.subr.mxu0 0.0
        %418 = vmatpush1.msra.mxu0 0.0
        %419 = vmatprep.subr.mxu0 0.0
        %420 = vmatpush1.msra.mxu0 0.0
        %421 = vmatprep.subr.mxu0 0.0
        %422 = vmatpush1.msra.mxu0 0.0
        %423 = vmatprep.subr.mxu0 0.0
        %424 = vmatpush1.msra.mxu0 0.0
        %425 = vmatprep.subr.mxu0 0.0
        %426 = vmatpush1.msra.mxu0 0.0
        %427 = vmatprep.subr.mxu0 0.0
        %428 = vmatpush1.msra.mxu0 0.0
        %429 = vmatprep.subr.mxu0 0.0
        %430 = vmatpush1.msra.mxu0 0.0
        %431 = vmatprep.subr.mxu0 0.0
        %432 = vmatpush1.msra.mxu0 0.0
        %433 = vmatprep.subr.mxu0 0.0
        %434 = vmatpush1.msra.mxu0 0.0
        %435 = vmatprep.subr.mxu0 0.0
        %436 = vmatpush1.msra.mxu0 0.0
        %437 = vmatprep.subr.mxu0 0.0
        %438 = vmatpush1.msra.mxu0 0.0
        %439 = vmatprep.subr.mxu0 0.0
        %440 = vmatpush1.msra.mxu0 0.0
        %441 = vmatprep.subr.mxu0 0.0
        %442 = vmatpush1.msra.mxu0 0.0
        %443 = vmatprep.subr.mxu0 0.0
        %444 = vmatpush1.msra.mxu0 0.0
        %445 = vmatprep.subr.mxu0 0.0
        %446 = vmatpush1.msra.mxu0 0.0
        %447 = vmatprep.subr.mxu0 0.0
        %448 = vmatpush1.msra.mxu0 0.0
        %449 = vmatprep.subr.mxu0 0.0
        %450 = vmatpush1.msra.mxu0 0.0
        %451 = vmatprep.subr.mxu0 0.0
        %452 = vmatpush1.msra.mxu0 0.0
        %453 = vmatprep.subr.mxu0 0.0
        %454 = vmatpush1.msra.mxu0 0.0
        %455 = vmatprep.subr.mxu0 0.0
        %456 = vmatpush1.msra.mxu0 0.0
        %457 = vmatprep.subr.mxu0 0.0
        %458 = vmatpush1.msra.mxu0 0.0
        %459 = vmatprep.subr.mxu0 0.0
        %460 = vmatpush1.msra.mxu0 0.0
        %461 = vmatprep.subr.mxu0 0.0
        %462 = vmatpush1.msra.mxu0 0.0
        %463 = vmatprep.subr.mxu0 0.0
        %464 = vmatpush1.msra.mxu0 0.0
        %465 = vmatprep.subr.mxu0 0.0
        %466 = vmatpush1.msra.mxu0 0.0
        %467 = vmatprep.subr.mxu0 0.0
        %468 = vmatpush1.msra.mxu0 0.0
        %469 = vmatprep.subr.mxu0 0.0
        %470 = vmatpush1.msra.mxu0 0.0
        %471 = vmatprep.subr.mxu0 0.0
        %472 = vmatpush1.msra.mxu0 0.0
        %473 = vmatprep.subr.mxu0 0.0
        %474 = vmatpush1.msra.mxu0 0.0
        %475 = vmatprep.subr.mxu0 0.0
        %476 = vmatpush1.msra.mxu0 0.0
        %477 = vmatprep.mubr.f32.mxu0 0.0
        %478 = vmatmul.mubr.f32.gmra.mrb[0].mxu0 %v398
        %v479 = vpop.f32.mrb[0].mxu0
        %v480 = vadd.f32 %v379, %v479
        %v481 = vpop.f32.mrb[0].mxu0
        %482 = vmatprep.mubr.f32.mxu0 0.0
        %483 = vmatmul.mubr.f32.gmra.mrb[0].mxu0 %v401
        %v484 = vpop.f32.mrb[0].mxu0
        %v485 = vadd.f32 %v384, %v484
        %v486 = vpop.f32.mrb[0].mxu0
        %487 = vmatprep.mubr.f32.mxu0 0.0
        %488 = vmatmul.mubr.f32.gmra.mrb[0].mxu0 %v404
        %v489 = vpop.f32.mrb[0].mxu0
        %v490 = vadd.f32 %v389, %v489
        %v491 = vpop.f32.mrb[0].mxu0
        %492 = vmatprep.mubr.f32.mxu0 0.0
        %493 = vmatmul.mubr.f32.gmra.mrb[0].mxu0 %v407
        %v494 = vpop.f32.mrb[0].mxu0
        %v495 = vadd.f32 %v394, %v494
        %v496 = vpop.f32.mrb[0].mxu0
        %497 = vdwg.mxu0
        %v498 = vmul.f32 %v480, %v480
        %v499 = vmul.f32 %v485, %v485
        %v500 = vmul.f32 %v490, %v490
        %v501 = vmul.f32 %v495, %v495
        %v502 = vsel %vm396, %v498, 0.0
        %v503 = vsel %vm396, %v499, 0.0
        %v504 = vadd.f32 %v502, %v503
        %v505 = vsel %vm396, %v500, 0.0
        %v506 = vadd.f32 %v504, %v505
        %v507 = vsel %vm396, %v501, 0.0
        %v508 = vadd.f32 %v506, %v507
        %509 = vadd.xlane.f32.xlu0 %v508
        %v510 = vpop.xlane.xlu0 %509
        %v511 = vrot.slane %v510, 4
        %v512 = vadd.f32 %v510, %v511
        %v513 = vrot.slane %v512, 2
        %v514 = vadd.f32 %v512, %v513
        %v515 = vrot.slane %v514, 1
        %v516 = vadd.f32 %v514, %v515
        %s517 = vtos %v516
        %s518 = smax.f32 %s517, 1e-24
        %v519 = vstv %s518
        %v520 = vrsqrt.pop %v519
        %s521 = vtos %v520
        %v522 = vstv %s521
        %v523 = vmul.f32 %v480, %v522
        %v524 = vmul.f32 %v485, %v522
        %v525 = vmul.f32 %v490, %v522
        %v526 = vmul.f32 %v495, %v522
        %527 = vst.msk [vmem:[%s247] sm:$0xff] %vm396, %v523
        %528 = vst.msk [vmem:[%s247 + $0x8] sm:$0xff] %vm396, %v524
        %529 = vst.msk [vmem:[%s247 + $0x10] sm:$0xff] %vm396, %v525
        %530 = vst.msk [vmem:[%s247 + $0x18] sm:$0xff] %vm396, %v526
      $region44: #{tpu_custom_call.1} parent=35 // pred_fallthru
        _
      %p531 = scmp.lt.s32.totalorder %s19, 1
      %s532 = scalar_select %p531, %s19, 1
      %s533 = smul.addr %s532, 4
      %s534 = smul.addr %s533, 8
      %s535 = scalar_lea.vmem %s4, %s534
      // Predicated region
      $region45: #{tpu_custom_call.1} parent=35 // pred_check
        %p536 = pneg %p141
      $region46: #{tpu_custom_call.1} parent=35 // pred_check_branch
        %538 = sbr.rel (%p536) target = $region48
      $region47: #{tpu_custom_call.1} parent=35 // pred_region
        _
      $region48: #{tpu_custom_call.1} parent=35 // pred_fallthru
        _
    $region36: #{tpu_custom_call.1} parent=5 // pred_fallthru
      _
    %p539 = scmp.le.s32.totalorder 2, %s10
    // Predicated region
    $region49: #{tpu_custom_call.1} parent=5 // pred_check
      %p540 = pneg %p539
    $region50: #{tpu_custom_call.1} parent=5 // pred_check_branch
      %542 = sbr.rel (%p540) target = $region52
    $region51: #{tpu_custom_call.1} parent=5 // pred_region
      %s543 = ssub.s32 %s10, 2
      // Predicated region
      $region53: #{tpu_custom_call.1} parent=51 // pred_check
        %p544 = pneg %p147
      $region54: #{tpu_custom_call.1} parent=51 // pred_check_branch
        %546 = sbr.rel (%p544) target = $region56
      $region55: #{tpu_custom_call.1} parent=51 // pred_region
        %p547 = scmp.lt.s32.totalorder %s21, 1
        %s548 = scalar_select %p547, %s21, 1
        %s549 = smul.addr %s548, 4
        %s550 = smul.addr %s549, 8
        %s551 = scalar_lea.vmem %s4, %s550
      $region56: #{tpu_custom_call.1} parent=51 // pred_fallthru
        _
    $region52: #{tpu_custom_call.1} parent=5 // pred_fallthru
      _
  $region6: #{tpu_custom_call.1} parent=0 // loop_footer
    %s14 = sadd.s32 1, %s10
  $region7: #{tpu_custom_call.1} parent=0 // loop_footer_branch
    %9 = sbr.rel target = $region3
  $region8: #{tpu_custom_call.1} parent=0 // loop_exit
    _

</llo_original>
